<compile_context>
chip_gen: v5e
topology: v5e:2x2
jax: 0.10.0
libtpu: 0.0.40
codegen_flags: <defaults>
</compile_context>

<pallas_src>
import numpy as np
import jax
import jax.numpy as jnp
from jax import lax
from jax.experimental import pallas as pl
from jax.experimental.pallas import tpu as pltpu


# ----------------------------- Pallas kernels ------------------------------
# Layout convention: activations are (C, M) with M = N*H*W on the lane axis.

def _mm_bn_relu_kernel(a_ref, b_ref, skip_ref, s_ref, bias_ref, raw_ref, act_ref):
    # raw = A @ B                          (f32 operands, f32 accumulation, MXU)
    # act = relu(scale * (raw + skip) + bias)   fused BN(eval)+ReLU epilogue
    acc = jnp.dot(a_ref[...], b_ref[...], preferred_element_type=jnp.float32)
    raw_ref[...] = acc
    act_ref[...] = jnp.maximum((acc + skip_ref[...]) * s_ref[...] + bias_ref[...], 0.0)


def _mm_bn_relu_noskip_kernel(a_ref, b_ref, s_ref, bias_ref, raw_ref, act_ref):
    acc = jnp.dot(a_ref[...], b_ref[...], preferred_element_type=jnp.float32)
    raw_ref[...] = acc
    act_ref[...] = jnp.maximum(acc * s_ref[...] + bias_ref[...], 0.0)


def _mm_add_kernel(a_ref, b_ref, add_ref, o_ref):
    o_ref[...] = jnp.dot(a_ref[...], b_ref[...],
                         preferred_element_type=jnp.float32) + add_ref[...]


_COMPILER_PARAMS = pltpu.CompilerParams(
    dimension_semantics=("parallel",),
    vmem_limit_bytes=32 * 1024 * 1024,   # explicit, safe on v5e/v6e/v7x
)


def _lane_tile(m):
    # Split the lane axis only when each block still keeps >= 2048 lanes
    # (dual-TC on v7x for big inputs).  At this model's shapes (M <= 512) this
    # always returns m -> a single full-array block per call.
    for t in (4096, 2048):
        if m % t == 0 and m // t >= 2:
            return t
    return m


# ----------------------------- Pallas wrappers ------------------------------

def pallas_mm_bn_relu(a, b, scale, bias, skip=None):
    """raw = a @ b ; act = relu(scale * (raw [+ skip]) + bias).

    a: (Cout, K) weights, b: (K, M) patches, skip: (Cout, M).
    raw/act: (Cout, M) f32, lane-dense along M.
    """
    co, k = a.shape
    kb, m = b.shape
    assert k == kb
    tm = _lane_tile(m)
    s2 = scale.reshape(co, 1).astype(jnp.float32)
    bb = bias.reshape(co, 1).astype(jnp.float32)

    a_spec = pl.BlockSpec((co, k), lambda i: (0, 0))   # resident weight
    b_spec = pl.BlockSpec((k, tm), lambda i: (0, i))
    o_spec = pl.BlockSpec((co, tm), lambda i: (0, i))
    p_spec = pl.BlockSpec((co, 1), lambda i: (0, 0))   # resident scale/bias
    out_shape = (jax.ShapeDtypeStruct((co, m), jnp.float32),
                 jax.ShapeDtypeStruct((co, m), jnp.float32))

    if skip is None:
        return pl.pallas_call(
            _mm_bn_relu_noskip_kernel,
            out_shape=out_shape,
            grid=(m // tm,),
            in_specs=[a_spec, b_spec, p_spec, p_spec],
            out_specs=(o_spec, o_spec),
            compiler_params=_COMPILER_PARAMS,
        )(a.astype(jnp.float32), b.astype(jnp.float32), s2, bb)
    return pl.pallas_call(
        _mm_bn_relu_kernel,
        out_shape=out_shape,
        grid=(m // tm,),
        in_specs=[a_spec, b_spec, o_spec, p_spec, p_spec],
        out_specs=(o_spec, o_spec),
        compiler_params=_COMPILER_PARAMS,
    )(a.astype(jnp.float32), b.astype(jnp.float32), skip.astype(jnp.float32), s2, bb)


def pallas_mm_add(a, b, addend):
    """(Cout, K) @ (K, M) + addend, f32 MXU with f32 accumulation."""
    co, k = a.shape
    kb, m = b.shape
    assert k == kb
    tm = _lane_tile(m)
    a_spec = pl.BlockSpec((co, k), lambda i: (0, 0))
    b_spec = pl.BlockSpec((k, tm), lambda i: (0, i))
    o_spec = pl.BlockSpec((co, tm), lambda i: (0, i))
    return pl.pallas_call(
        _mm_add_kernel,
        out_shape=jax.ShapeDtypeStruct((co, m), jnp.float32),
        grid=(m // tm,),
        in_specs=[a_spec, b_spec, o_spec],
        out_specs=o_spec,
        compiler_params=_COMPILER_PARAMS,
    )(a.astype(jnp.float32), b.astype(jnp.float32), addend.astype(jnp.float32))


# --------------------------- layout / patch glue ----------------------------
# All of this is tiny XLA work that fuses inside the single jitted forward.

def _to_cm(x_nchw):
    n, c, h, w = x_nchw.shape
    return jnp.transpose(x_nchw, (1, 0, 2, 3)).reshape(c, n * h * w).astype(jnp.float32)


def _from_cm(x_cm, n, h, w):
    c = x_cm.shape[0]
    return jnp.transpose(x_cm.reshape(c, n, h, w), (1, 0, 2, 3))


def _conv_patches(x_cm, n, h, w, k, stride, pad):
    """(C, N*H*W) -> im2col^T of shape (k*k*C, N*Hout*Wout); K order (kh,kw,c)."""
    c = x_cm.shape[0]
    x = x_cm.reshape(c, n, h, w)
    x = jnp.pad(x, ((0, 0), (0, 0), (pad, pad), (pad, pad)))
    hout = (h + 2 * pad - k) // stride + 1
    wout = (w + 2 * pad - k) // stride + 1
    taps = []
    for kh in range(k):
        for kw in range(k):
            taps.append(x[:, :, kh:kh + stride * (hout - 1) + 1:stride,
                              kw:kw + stride * (wout - 1) + 1:stride])
    p = jnp.stack(taps, axis=0)                      # (k*k, C, N, hout, wout)
    return p.reshape(k * k * c, n * hout * wout), hout, wout


def _deconv_phase_weight(wt_pt):
    """ConvTranspose2d(k=4, s=2, p=1) weight (Cin, Cout, 4, 4) -> equivalent
    stride-1 3x3 weight producing the 4 output-parity phases stacked along the
    output-channel axis (phase-major: column index = (2*dy+dx)*Cout + cout).
    Runs once at prepare time (numpy, host)."""
    wt = np.asarray(wt_pt)
    cin, cout = wt.shape[0], wt.shape[1]
    wc = np.zeros((3, 3, cin, 4 * cout), wt.dtype)
    for dy in range(2):
        for dx in range(2):
            ph = 2 * dy + dx
            for a in range(2):
                for b in range(2):
                    ky = (3 if dy == 0 else 2) - 2 * a
                    kx = (3 if dx == 0 else 2) - 2 * b
                    wc[dy + a, dx + b, :, ph * cout:(ph + 1) * cout] = wt[:, :, ky, kx]
    return wc


def _phase_split(x_cm, n, h2, w2):
    """(C, N*H2*W2) on the fine grid -> (4*C, N*(H2//2)*(W2//2)), phase-major."""
    c = x_cm.shape[0]
    h, w = h2 // 2, w2 // 2
    x = x_cm.reshape(c, n, h, 2, w, 2)               # (c, n, p, dy, q, dx)
    x = jnp.transpose(x, (3, 5, 0, 1, 2, 4))         # (dy, dx, c, n, p, q)
    return x.reshape(4 * c, n * h * w)


def _phase_merge(y_ph, cout, n, h, w):
    """(4*Cout, N*h*w), phase-major -> (Cout, N*(2h)*(2w)) spatially interleaved."""
    y = y_ph.reshape(2, 2, cout, n, h, w)            # (dy, dx, c, n, p, q)
    y = jnp.transpose(y, (2, 3, 4, 0, 5, 1))         # (c, n, p, dy, q, dx)
    return y.reshape(cout, n * (2 * h) * (2 * w))


# ----------------------------- parameters -----------------------------------

def init_params(key, depth=4, growtha=2):
    c1i, c1o = depth, depth + growtha
    c2i, c2o = depth + growtha, depth + 2 * growtha
    d3i, d3o = depth + 2 * growtha, depth + growtha
    d4i, d4o = depth + growtha, depth
    ks = jax.random.split(key, 8)

    def bn(k, c):
        k1, k2, k3, k4 = jax.random.split(k, 4)
        gamma = jax.random.uniform(k1, (c,), minval=0.5, maxval=1.5)
        beta = 0.1 * jax.random.normal(k2, (c,))
        mean = 0.1 * jax.random.normal(k3, (c,))
        var = jax.random.uniform(k4, (c,), minval=0.5, maxval=1.5)
        scale = gamma / jnp.sqrt(var + 1e-5)
        bias = beta - mean * scale
        return scale.astype(jnp.float32), bias.astype(jnp.float32)

    p = {}
    p['bn1_scale'], p['bn1_bias'] = bn(ks[0], c1i)
    p['bn2_scale'], p['bn2_bias'] = bn(ks[1], c2i)
    p['bn3_scale'], p['bn3_bias'] = bn(ks[2], d3i)
    p['bn4_scale'], p['bn4_bias'] = bn(ks[3], d4i)
    # Conv2d weights directly in HWIO.
    p['conv1_w'] = 0.2 * jax.random.normal(ks[4], (3, 3, c1i, c1o), jnp.float32)
    p['conv2_w'] = 0.2 * jax.random.normal(ks[5], (3, 3, c2i, c2o), jnp.float32)
    # ConvTranspose2d weights in PyTorch layout (Cin, Cout, kH, kW).
    p['deconv3_w'] = 0.2 * jax.random.normal(ks[6], (d3i, d3o, 4, 4), jnp.float32)
    p['deconv4_w'] = 0.2 * jax.random.normal(ks[7], (d4i, d4o, 4, 4), jnp.float32)
    return p


def prepare_params(params):
    """One-time (host-side) flattening of weights into MXU-ready (Cout, K)
    matrices and folded BN scale/bias vectors.  Hoisted out of the jitted
    per-step path per the performance review."""
    c1o = params['conv1_w'].shape[-1]
    c2o = params['conv2_w'].shape[-1]
    d3o = params['deconv3_w'].shape[1]
    d4o = params['deconv4_w'].shape[1]
    w3 = _deconv_phase_weight(params['deconv3_w'])
    w4 = _deconv_phase_weight(params['deconv4_w'])
    mp = {
        'a_conv1': jnp.asarray(np.asarray(params['conv1_w']).reshape(-1, c1o).T,
                               jnp.float32),
        'a_conv2': jnp.asarray(np.asarray(params['conv2_w']).reshape(-1, c2o).T,
                               jnp.float32),
        'a_dec3': jnp.asarray(w3.reshape(-1, 4 * d3o).T, jnp.float32),
        'a_dec4': jnp.asarray(w4.reshape(-1, 4 * d4o).T, jnp.float32),
        'bn1_scale': params['bn1_scale'], 'bn1_bias': params['bn1_bias'],
        'bn2_scale': params['bn2_scale'], 'bn2_bias': params['bn2_bias'],
        'bn3_scale': params['bn3_scale'], 'bn3_bias': params['bn3_bias'],
        # bn4 acts on the 4-phase-packed deconv3 output -> tile x4 (phase-major).
        'bn4_scale4': jnp.tile(params['bn4_scale'], 4),
        'bn4_bias4': jnp.tile(params['bn4_bias'], 4),
    }
    return mp


# ----------------------------- forward ---------------------------------------

def _forward_impl(x1, x2, x3, mp):
    n, _, h0, w0 = x1.shape
    x1_cm = _to_cm(x1)
    x2_cm = None if x2 is None else _to_cm(x2)
    x3_cm = None if x3 is None else _to_cm(x3)

    d3o = mp['a_dec3'].shape[0] // 4
    d4o = mp['a_dec4'].shape[0] // 4

    # a1 = relu(bn1(x1)) -- tiny elementwise op; left to XLA so it fuses with
    # the im2col patch construction (no standalone pallas_call).
    a1 = jnp.maximum(x1_cm * mp['bn1_scale'][:, None] + mp['bn1_bias'][:, None], 0.0)

    # res1 = conv1(a1);  a2 = relu(bn2(res1 [+ x2]))          (fused epilogue)
    p1, h1, w1 = _conv_patches(a1, n, h0, w0, 3, 2, 1)
    res1, a2 = pallas_mm_bn_relu(mp['a_conv1'], p1, mp['bn2_scale'],
                                 mp['bn2_bias'], skip=x2_cm)

    # res2 = conv2(a2);  a3 = relu(bn3(res2 [+ x3]))
    p2, h2, w2 = _conv_patches(a2, n, h1, w1, 3, 2, 1)
    res2, a3 = pallas_mm_bn_relu(mp['a_conv2'], p2, mp['bn3_scale'],
                                 mp['bn3_bias'], skip=x3_cm)

    # res3 = deconv3(a3) (4-phase sub-pixel matmul);  a4 = relu(bn4(res3 + res1))
    p3, _, _ = _conv_patches(a3, n, h2, w2, 3, 1, 1)
    res1_ph = _phase_split(res1, n, h1, w1)
    res3_ph, a4_ph = pallas_mm_bn_relu(mp['a_dec3'], p3, mp['bn4_scale4'],
                                       mp['bn4_bias4'], skip=res1_ph)
    res3 = _phase_merge(res3_ph, d3o, n, h2, w2)
    a4 = _phase_merge(a4_ph, d3o, n, h2, w2)

    # res4 = deconv4(a4) + x1         (+x1 fused into the matmul as an addend)
    p4, _, _ = _conv_patches(a4, n, h1, w1, 3, 1, 1)
    x1_ph = _phase_split(x1_cm, n, h0, w0)
    res4_ph = pallas_mm_add(mp['a_dec4'], p4, x1_ph)
    res4 = _phase_merge(res4_ph, d4o, n, h1, w1)

    return (_from_cm(res4, n, h0, w0),
            _from_cm(res3, n, h1, w1),
            _from_cm(res2, n, h2, w2))


_forward_jit = jax.jit(_forward_impl)


def double_couple_forward(x, mat_params):
    """slink='A', after=False, last_down=False, last_branch=3, classify=0, version=1."""
    x1, x2, x3, pred = x
    res4, res3, res2 = _forward_jit(x1, x2, x3, mat_params)
    # classify == 0 -> appended prediction is None.  The Python-list mutation
    # stays outside the jitted graph.
    pred.append(None)
    return (res4, res3, res2, pred)


# ----------------------------- pure-JAX reference ----------------------------

def reference_forward(x, params):
    x1, x2, x3, pred = x
    to_nhwc = lambda t: None if t is None else jnp.transpose(t, (0, 2, 3, 1)).astype(jnp.float32)
    to_nchw = lambda t: jnp.transpose(t, (0, 3, 1, 2))
    x1n, x2n, x3n = to_nhwc(x1), to_nhwc(x2), to_nhwc(x3)

    def bn_relu(t, s, b, skip=None):
        if skip is not None:
            t = t + skip
        return jnp.maximum(t * s.reshape(1, 1, 1, -1) + b.reshape(1, 1, 1, -1), 0.0)

    def conv(a, w):
        return lax.conv_general_dilated(a, w, (2, 2), [(1, 1), (1, 1)],
                                        dimension_numbers=('NHWC', 'HWIO', 'NHWC'),
                                        precision=lax.Precision.HIGHEST)

    def deconv(a, wt):
        w_conv = jnp.transpose(wt[:, :, ::-1, ::-1], (2, 3, 0, 1))
        return lax.conv_general_dilated(a, w_conv, (1, 1), [(2, 2), (2, 2)],
                                        lhs_dilation=(2, 2),
                                        dimension_numbers=('NHWC', 'HWIO', 'NHWC'),
                                        precision=lax.Precision.HIGHEST)

    res1 = conv(bn_relu(x1n, params['bn1_scale'], params['bn1_bias']), params['conv1_w'])
    res2 = conv(bn_relu(res1, params['bn2_scale'], params['bn2_bias'], x2n), params['conv2_w'])
    res3 = deconv(bn_relu(res2, params['bn3_scale'], params['bn3_bias'], x3n), params['deconv3_w'])
    res4 = deconv(bn_relu(res3, params['bn4_scale'], params['bn4_bias'], res1), params['deconv4_w']) + x1n
    pred.append(None)
    return (to_nchw(res4), to_nchw(res3), to_nchw(res2), pred)


# ----------------------------- main -------------------------------------------

if __name__ == "__main__":
    key = jax.random.PRNGKey(0)
    k1, k2, k3, kp = jax.random.split(key, 4)

    N, depth, H, W = 2, 4, 16, 16
    growtha = 2
    x1 = jax.random.normal(k1, (N, depth, H, W), jnp.float32)                         # NCHW
    x2 = jax.random.normal(k2, (N, depth + growtha, H // 2, W // 2), jnp.float32)      # matches res1
    x3 = jax.random.normal(k3, (N, depth + 2 * growtha, H // 4, W // 4), jnp.float32)  # matches res2
    params = init_params(kp, depth, growtha)
    mat_params = prepare_params(params)   # one-time weight flattening (hoisted)

    res4, res3, res2, pred = double_couple_forward((x1, x2, x3, []), mat_params)
    jax.block_until_ready((res4, res3, res2))

    r4, r3, r2, _ = reference_forward((x1, x2, x3, []), params)
    # Operands are f32 end-to-end; tolerance covers the MXU's default internal
    # bf16 rounding across the 4-stage skip chain vs. the HIGHEST-precision
    # XLA reference.
    np.testing.assert_allclose(np.asarray(res2), np.asarray(r2), rtol=5e-2, atol=5e-2)
    np.testing.assert_allclose(np.asarray(res3), np.asarray(r3), rtol=5e-2, atol=5e-2)
    np.testing.assert_allclose(np.asarray(res4), np.asarray(r4), rtol=5e-2, atol=5e-2)

    assert res4.shape == (N, depth, H, W)
    assert res3.shape == (N, depth + growtha, H // 2, W // 2)
    assert res2.shape == (N, depth + 2 * growtha, H // 4, W // 4)
    assert pred == [None]
    print("KERNEL_OK")
</pallas_src>

<mosaic_0001>
module attributes {stable_mosaic.version = 11 : i64} {
  func.func @_mm_bn_relu_kernel(%arg0: i32, %arg1: memref<6x36xf32, #tpu.memory_space<vmem>>, %arg2: memref<36x128xf32, #tpu.memory_space<vmem>>, %arg3: memref<6x128xf32, #tpu.memory_space<vmem>>, %arg4: memref<6x1xf32, #tpu.memory_space<vmem>>, %arg5: memref<6x1xf32, #tpu.memory_space<vmem>>, %arg6: memref<6x128xf32, #tpu.memory_space<vmem>>, %arg7: memref<6x128xf32, #tpu.memory_space<vmem>>) attributes {dimension_semantics = [#tpu.dimension_semantics<parallel>], iteration_bounds = array<i64: 1>, scalar_prefetch = 0 : i64, scratch_operands = 0 : i64, tpu.core_type = #tpu.core_type<tc>, window_params = [{pipeline_mode = #tpu.pipeline_mode<synchronous>, transform_indices = @transform_0, window_bounds = array<i64: 6, 36>}, {transform_indices = @transform_1, window_bounds = array<i64: 36, 128>}, {transform_indices = @transform_2, window_bounds = array<i64: 6, 128>}, {pipeline_mode = #tpu.pipeline_mode<synchronous>, transform_indices = @transform_3, window_bounds = array<i64: 6, 1>}, {pipeline_mode = #tpu.pipeline_mode<synchronous>, transform_indices = @transform_4, window_bounds = array<i64: 6, 1>}, {transform_indices = @transform_5, window_bounds = array<i64: 6, 128>}, {transform_indices = @transform_6, window_bounds = array<i64: 6, 128>}]} {
    %c0 = arith.constant 0 : index
    %c0_0 = arith.constant 0 : index
    %0 = vector.load %arg1[%c0, %c0_0] : memref<6x36xf32, #tpu.memory_space<vmem>>, vector<6x36xf32>
    %c0_1 = arith.constant 0 : index
    %c0_2 = arith.constant 0 : index
    %1 = vector.load %arg2[%c0_1, %c0_2] : memref<36x128xf32, #tpu.memory_space<vmem>>, vector<36x128xf32>
    %cst = arith.constant dense<0.000000e+00> : vector<6x128xf32>
    %2 = tpu.matmul %0, %1, %cst {dimension_numbers = #tpu.dot_dimension_numbers<[1], [0], [0], [1], [0, 0, 1, 1], [], []>} : vector<6x36xf32>, vector<36x128xf32>, vector<6x128xf32> -> vector<6x128xf32>
    %c0_3 = arith.constant 0 : index
    %c0_4 = arith.constant 0 : index
    %3 = vector.load %arg6[%c0_3, %c0_4] : memref<6x128xf32, #tpu.memory_space<vmem>>, vector<6x128xf32>
    tpu.vector_store %arg6[%c0_3, %c0_4], %2 {strides = array<i32>} : memref<6x128xf32, #tpu.memory_space<vmem>>, vector<6x128xf32>,
    %c0_5 = arith.constant 0 : index
    %c0_6 = arith.constant 0 : index
    %4 = vector.load %arg3[%c0_5, %c0_6] : memref<6x128xf32, #tpu.memory_space<vmem>>, vector<6x128xf32>
    %5 = arith.addf %2, %4 : vector<6x128xf32>
    %c0_7 = arith.constant 0 : index
    %c0_8 = arith.constant 0 : index
    %6 = vector.load %arg4[%c0_7, %c0_8] : memref<6x1xf32, #tpu.memory_space<vmem>>, vector<6x1xf32>
    %7 = vector.broadcast %6 : vector<6x1xf32> to vector<6x128xf32>
    %8 = arith.mulf %5, %7 : vector<6x128xf32>
    %c0_9 = arith.constant 0 : index
    %c0_10 = arith.constant 0 : index
    %9 = vector.load %arg5[%c0_9, %c0_10] : memref<6x1xf32, #tpu.memory_space<vmem>>, vector<6x1xf32>
    %10 = vector.broadcast %9 : vector<6x1xf32> to vector<6x128xf32>
    %11 = arith.addf %8, %10 : vector<6x128xf32>
    %cst_11 = arith.constant 0.000000e+00 : f32
    %12 = vector.broadcast %cst_11 : f32 to vector<6x128xf32>
    %13 = arith.maximumf %11, %12 : vector<6x128xf32>
    %c0_12 = arith.constant 0 : index
    %c0_13 = arith.constant 0 : index
    %14 = vector.load %arg7[%c0_12, %c0_13] : memref<6x128xf32, #tpu.memory_space<vmem>>, vector<6x128xf32>
    tpu.vector_store %arg7[%c0_12, %c0_13], %13 {strides = array<i32>} : memref<6x128xf32, #tpu.memory_space<vmem>>, vector<6x128xf32>,
    return
  }
  func.func @transform_0(%arg0: i32) -> (i32, i32) {
    %c0_i32 = arith.constant 0 : i32
    %c0_i32_0 = arith.constant 0 : i32
    %c0_i32_1 = arith.constant 0 : i32
    return %c0_i32, %c0_i32_0 : i32, i32
  }
  func.func @transform_1(%arg0: i32) -> (i32, i32) {
    %c0_i32 = arith.constant 0 : i32
    %c0_i32_0 = arith.constant 0 : i32
    return %c0_i32, %arg0 : i32, i32
  }
  func.func @transform_2(%arg0: i32) -> (i32, i32) {
    %c0_i32 = arith.constant 0 : i32
    %c0_i32_0 = arith.constant 0 : i32
    return %c0_i32, %arg0 : i32, i32
  }
  func.func @transform_3(%arg0: i32) -> (i32, i32) {
    %c0_i32 = arith.constant 0 : i32
    %c0_i32_0 = arith.constant 0 : i32
    %c0_i32_1 = arith.constant 0 : i32
    return %c0_i32, %c0_i32_0 : i32, i32
  }
  func.func @transform_4(%arg0: i32) -> (i32, i32) {
    %c0_i32 = arith.constant 0 : i32
    %c0_i32_0 = arith.constant 0 : i32
    %c0_i32_1 = arith.constant 0 : i32
    return %c0_i32, %c0_i32_0 : i32, i32
  }
  func.func @transform_5(%arg0: i32) -> (i32, i32) {
    %c0_i32 = arith.constant 0 : i32
    %c0_i32_0 = arith.constant 0 : i32
    return %c0_i32, %arg0 : i32, i32
  }
  func.func @transform_6(%arg0: i32) -> (i32, i32) {
    %c0_i32 = arith.constant 0 : i32
    %c0_i32_0 = arith.constant 0 : i32
    return %c0_i32, %arg0 : i32, i32
  }
}

module attributes {stable_mosaic.version = 11 : i64} {
  func.func @_mm_bn_relu_kernel(%arg0: i32, %arg1: memref<8x54xf32, #tpu.memory_space<vmem>>, %arg2: memref<54x32xf32, #tpu.memory_space<vmem>>, %arg3: memref<8x32xf32, #tpu.memory_space<vmem>>, %arg4: memref<8x1xf32, #tpu.memory_space<vmem>>, %arg5: memref<8x1xf32, #tpu.memory_space<vmem>>, %arg6: memref<8x32xf32, #tpu.memory_space<vmem>>, %arg7: memref<8x32xf32, #tpu.memory_space<vmem>>) attributes {dimension_semantics = [#tpu.dimension_semantics<parallel>], iteration_bounds = array<i64: 1>, scalar_prefetch = 0 : i64, scratch_operands = 0 : i64, tpu.core_type = #tpu.core_type<tc>, window_params = [{pipeline_mode = #tpu.pipeline_mode<synchronous>, transform_indices = @transform_0, window_bounds = array<i64: 8, 54>}, {transform_indices = @transform_1, window_bounds = array<i64: 54, 32>}, {transform_indices = @transform_2, window_bounds = array<i64: 8, 32>}, {pipeline_mode = #tpu.pipeline_mode<synchronous>, transform_indices = @transform_3, window_bounds = array<i64: 8, 1>}, {pipeline_mode = #tpu.pipeline_mode<synchronous>, transform_indices = @transform_4, window_bounds = array<i64: 8, 1>}, {transform_indices = @transform_5, window_bounds = array<i64: 8, 32>}, {transform_indices = @transform_6, window_bounds = array<i64: 8, 32>}]} {
    %c0 = arith.constant 0 : index
    %c0_0 = arith.constant 0 : index
    %0 = vector.load %arg1[%c0, %c0_0] : memref<8x54xf32, #tpu.memory_space<vmem>>, vector<8x54xf32>
    %c0_1 = arith.constant 0 : index
    %c0_2 = arith.constant 0 : index
    %1 = vector.load %arg2[%c0_1, %c0_2] : memref<54x32xf32, #tpu.memory_space<vmem>>, vector<54x32xf32>
    %cst = arith.constant dense<0.000000e+00> : vector<8x32xf32>
    %2 = tpu.matmul %0, %1, %cst {dimension_numbers = #tpu.dot_dimension_numbers<[1], [0], [0], [1], [0, 0, 1, 1], [], []>} : vector<8x54xf32>, vector<54x32xf32>, vector<8x32xf32> -> vector<8x32xf32>
    %c0_3 = arith.constant 0 : index
    %c0_4 = arith.constant 0 : index
    %3 = vector.load %arg6[%c0_3, %c0_4] : memref<8x32xf32, #tpu.memory_space<vmem>>, vector<8x32xf32>
    tpu.vector_store %arg6[%c0_3, %c0_4], %2 {strides = array<i32>} : memref<8x32xf32, #tpu.memory_space<vmem>>, vector<8x32xf32>,
    %c0_5 = arith.constant 0 : index
    %c0_6 = arith.constant 0 : index
    %4 = vector.load %arg3[%c0_5, %c0_6] : memref<8x32xf32, #tpu.memory_space<vmem>>, vector<8x32xf32>
    %5 = arith.addf %2, %4 : vector<8x32xf32>
    %c0_7 = arith.constant 0 : index
    %c0_8 = arith.constant 0 : index
    %6 = vector.load %arg4[%c0_7, %c0_8] : memref<8x1xf32, #tpu.memory_space<vmem>>, vector<8x1xf32>
    %7 = vector.broadcast %6 : vector<8x1xf32> to vector<8x32xf32>
    %8 = arith.mulf %5, %7 : vector<8x32xf32>
    %c0_9 = arith.constant 0 : index
    %c0_10 = arith.constant 0 : index
    %9 = vector.load %arg5[%c0_9, %c0_10] : memref<8x1xf32, #tpu.memory_space<vmem>>, vector<8x1xf32>
    %10 = vector.broadcast %9 : vector<8x1xf32> to vector<8x32xf32>
    %11 = arith.addf %8, %10 : vector<8x32xf32>
    %cst_11 = arith.constant 0.000000e+00 : f32
    %12 = vector.broadcast %cst_11 : f32 to vector<8x32xf32>
    %13 = arith.maximumf %11, %12 : vector<8x32xf32>
    %c0_12 = arith.constant 0 : index
    %c0_13 = arith.constant 0 : index
    %14 = vector.load %arg7[%c0_12, %c0_13] : memref<8x32xf32, #tpu.memory_space<vmem>>, vector<8x32xf32>
    tpu.vector_store %arg7[%c0_12, %c0_13], %13 {strides = array<i32>} : memref<8x32xf32, #tpu.memory_space<vmem>>, vector<8x32xf32>,
    return
  }
  func.func @transform_0(%arg0: i32) -> (i32, i32) {
    %c0_i32 = arith.constant 0 : i32
    %c0_i32_0 = arith.constant 0 : i32
    %c0_i32_1 = arith.constant 0 : i32
    return %c0_i32, %c0_i32_0 : i32, i32
  }
  func.func @transform_1(%arg0: i32) -> (i32, i32) {
    %c0_i32 = arith.constant 0 : i32
    %c0_i32_0 = arith.constant 0 : i32
    return %c0_i32, %arg0 : i32, i32
  }
  func.func @transform_2(%arg0: i32) -> (i32, i32) {
    %c0_i32 = arith.constant 0 : i32
    %c0_i32_0 = arith.constant 0 : i32
    return %c0_i32, %arg0 : i32, i32
  }
  func.func @transform_3(%arg0: i32) -> (i32, i32) {
    %c0_i32 = arith.constant 0 : i32
    %c0_i32_0 = arith.constant 0 : i32
    %c0_i32_1 = arith.constant 0 : i32
    return %c0_i32, %c0_i32_0 : i32, i32
  }
  func.func @transform_4(%arg0: i32) -> (i32, i32) {
    %c0_i32 = arith.constant 0 : i32
    %c0_i32_0 = arith.constant 0 : i32
    %c0_i32_1 = arith.constant 0 : i32
    return %c0_i32, %c0_i32_0 : i32, i32
  }
  func.func @transform_5(%arg0: i32) -> (i32, i32) {
    %c0_i32 = arith.constant 0 : i32
    %c0_i32_0 = arith.constant 0 : i32
    return %c0_i32, %arg0 : i32, i32
  }
  func.func @transform_6(%arg0: i32) -> (i32, i32) {
    %c0_i32 = arith.constant 0 : i32
    %c0_i32_0 = arith.constant 0 : i32
    return %c0_i32, %arg0 : i32, i32
  }
}

module attributes {stable_mosaic.version = 11 : i64} {
  func.func @_mm_bn_relu_kernel(%arg0: i32, %arg1: memref<24x72xf32, #tpu.memory_space<vmem>>, %arg2: memref<72x32xf32, #tpu.memory_space<vmem>>, %arg3: memref<24x32xf32, #tpu.memory_space<vmem>>, %arg4: memref<24x1xf32, #tpu.memory_space<vmem>>, %arg5: memref<24x1xf32, #tpu.memory_space<vmem>>, %arg6: memref<24x32xf32, #tpu.memory_space<vmem>>, %arg7: memref<24x32xf32, #tpu.memory_space<vmem>>) attributes {dimension_semantics = [#tpu.dimension_semantics<parallel>], iteration_bounds = array<i64: 1>, scalar_prefetch = 0 : i64, scratch_operands = 0 : i64, tpu.core_type = #tpu.core_type<tc>, window_params = [{pipeline_mode = #tpu.pipeline_mode<synchronous>, transform_indices = @transform_0, window_bounds = array<i64: 24, 72>}, {transform_indices = @transform_1, window_bounds = array<i64: 72, 32>}, {transform_indices = @transform_2, window_bounds = array<i64: 24, 32>}, {pipeline_mode = #tpu.pipeline_mode<synchronous>, transform_indices = @transform_3, window_bounds = array<i64: 24, 1>}, {pipeline_mode = #tpu.pipeline_mode<synchronous>, transform_indices = @transform_4, window_bounds = array<i64: 24, 1>}, {transform_indices = @transform_5, window_bounds = array<i64: 24, 32>}, {transform_indices = @transform_6, window_bounds = array<i64: 24, 32>}]} {
    %c0 = arith.constant 0 : index
    %c0_0 = arith.constant 0 : index
    %0 = vector.load %arg1[%c0, %c0_0] : memref<24x72xf32, #tpu.memory_space<vmem>>, vector<24x72xf32>
    %c0_1 = arith.constant 0 : index
    %c0_2 = arith.constant 0 : index
    %1 = vector.load %arg2[%c0_1, %c0_2] : memref<72x32xf32, #tpu.memory_space<vmem>>, vector<72x32xf32>
    %cst = arith.constant dense<0.000000e+00> : vector<24x32xf32>
    %2 = tpu.matmul %0, %1, %cst {dimension_numbers = #tpu.dot_dimension_numbers<[1], [0], [0], [1], [0, 0, 1, 1], [], []>} : vector<24x72xf32>, vector<72x32xf32>, vector<24x32xf32> -> vector<24x32xf32>
    %c0_3 = arith.constant 0 : index
    %c0_4 = arith.constant 0 : index
    %3 = vector.load %arg6[%c0_3, %c0_4] : memref<24x32xf32, #tpu.memory_space<vmem>>, vector<24x32xf32>
    tpu.vector_store %arg6[%c0_3, %c0_4], %2 {strides = array<i32>} : memref<24x32xf32, #tpu.memory_space<vmem>>, vector<24x32xf32>,
    %c0_5 = arith.constant 0 : index
    %c0_6 = arith.constant 0 : index
    %4 = vector.load %arg3[%c0_5, %c0_6] : memref<24x32xf32, #tpu.memory_space<vmem>>, vector<24x32xf32>
    %5 = arith.addf %2, %4 : vector<24x32xf32>
    %c0_7 = arith.constant 0 : index
    %c0_8 = arith.constant 0 : index
    %6 = vector.load %arg4[%c0_7, %c0_8] : memref<24x1xf32, #tpu.memory_space<vmem>>, vector<24x1xf32>
    %7 = vector.broadcast %6 : vector<24x1xf32> to vector<24x32xf32>
    %8 = arith.mulf %5, %7 : vector<24x32xf32>
    %c0_9 = arith.constant 0 : index
    %c0_10 = arith.constant 0 : index
    %9 = vector.load %arg5[%c0_9, %c0_10] : memref<24x1xf32, #tpu.memory_space<vmem>>, vector<24x1xf32>
    %10 = vector.broadcast %9 : vector<24x1xf32> to vector<24x32xf32>
    %11 = arith.addf %8, %10 : vector<24x32xf32>
    %cst_11 = arith.constant 0.000000e+00 : f32
    %12 = vector.broadcast %cst_11 : f32 to vector<24x32xf32>
    %13 = arith.maximumf %11, %12 : vector<24x32xf32>
    %c0_12 = arith.constant 0 : index
    %c0_13 = arith.constant 0 : index
    %14 = vector.load %arg7[%c0_12, %c0_13] : memref<24x32xf32, #tpu.memory_space<vmem>>, vector<24x32xf32>
    tpu.vector_store %arg7[%c0_12, %c0_13], %13 {strides = array<i32>} : memref<24x32xf32, #tpu.memory_space<vmem>>, vector<24x32xf32>,
    return
  }
  func.func @transform_0(%arg0: i32) -> (i32, i32) {
    %c0_i32 = arith.constant 0 : i32
    %c0_i32_0 = arith.constant 0 : i32
    %c0_i32_1 = arith.constant 0 : i32
    return %c0_i32, %c0_i32_0 : i32, i32
  }
  func.func @transform_1(%arg0: i32) -> (i32, i32) {
    %c0_i32 = arith.constant 0 : i32
    %c0_i32_0 = arith.constant 0 : i32
    return %c0_i32, %arg0 : i32, i32
  }
  func.func @transform_2(%arg0: i32) -> (i32, i32) {
    %c0_i32 = arith.constant 0 : i32
    %c0_i32_0 = arith.constant 0 : i32
    return %c0_i32, %arg0 : i32, i32
  }
  func.func @transform_3(%arg0: i32) -> (i32, i32) {
    %c0_i32 = arith.constant 0 : i32
    %c0_i32_0 = arith.constant 0 : i32
    %c0_i32_1 = arith.constant 0 : i32
    return %c0_i32, %c0_i32_0 : i32, i32
  }
  func.func @transform_4(%arg0: i32) -> (i32, i32) {
    %c0_i32 = arith.constant 0 : i32
    %c0_i32_0 = arith.constant 0 : i32
    %c0_i32_1 = arith.constant 0 : i32
    return %c0_i32, %c0_i32_0 : i32, i32
  }
  func.func @transform_5(%arg0: i32) -> (i32, i32) {
    %c0_i32 = arith.constant 0 : i32
    %c0_i32_0 = arith.constant 0 : i32
    return %c0_i32, %arg0 : i32, i32
  }
  func.func @transform_6(%arg0: i32) -> (i32, i32) {
    %c0_i32 = arith.constant 0 : i32
    %c0_i32_0 = arith.constant 0 : i32
    return %c0_i32, %arg0 : i32, i32
  }
}

module attributes {stable_mosaic.version = 11 : i64} {
  func.func @_mm_add_kernel(%arg0: i32, %arg1: memref<16x54xf32, #tpu.memory_space<vmem>>, %arg2: memref<54x128xf32, #tpu.memory_space<vmem>>, %arg3: memref<16x128xf32, #tpu.memory_space<vmem>>, %arg4: memref<16x128xf32, #tpu.memory_space<vmem>>) attributes {dimension_semantics = [#tpu.dimension_semantics<parallel>], iteration_bounds = array<i64: 1>, scalar_prefetch = 0 : i64, scratch_operands = 0 : i64, tpu.core_type = #tpu.core_type<tc>, window_params = [{pipeline_mode = #tpu.pipeline_mode<synchronous>, transform_indices = @transform_0, window_bounds = array<i64: 16, 54>}, {transform_indices = @transform_1, window_bounds = array<i64: 54, 128>}, {transform_indices = @transform_2, window_bounds = array<i64: 16, 128>}, {transform_indices = @transform_3, window_bounds = array<i64: 16, 128>}]} {
    %c0 = arith.constant 0 : index
    %c0_0 = arith.constant 0 : index
    %0 = vector.load %arg1[%c0, %c0_0] : memref<16x54xf32, #tpu.memory_space<vmem>>, vector<16x54xf32>
    %c0_1 = arith.constant 0 : index
    %c0_2 = arith.constant 0 : index
    %1 = vector.load %arg2[%c0_1, %c0_2] : memref<54x128xf32, #tpu.memory_space<vmem>>, vector<54x128xf32>
    %cst = arith.constant dense<0.000000e+00> : vector<16x128xf32>
    %2 = tpu.matmul %0, %1, %cst {dimension_numbers = #tpu.dot_dimension_numbers<[1], [0], [0], [1], [0, 0, 1, 1], [], []>} : vector<16x54xf32>, vector<54x128xf32>, vector<16x128xf32> -> vector<16x128xf32>
    %c0_3 = arith.constant 0 : index
    %c0_4 = arith.constant 0 : index
    %3 = vector.load %arg3[%c0_3, %c0_4] : memref<16x128xf32, #tpu.memory_space<vmem>>, vector<16x128xf32>
    %4 = arith.addf %2, %3 : vector<16x128xf32>
    %c0_5 = arith.constant 0 : index
    %c0_6 = arith.constant 0 : index
    %5 = vector.load %arg4[%c0_5, %c0_6] : memref<16x128xf32, #tpu.memory_space<vmem>>, vector<16x128xf32>
    tpu.vector_store %arg4[%c0_5, %c0_6], %4 {strides = array<i32>} : memref<16x128xf32, #tpu.memory_space<vmem>>, vector<16x128xf32>,
    return
  }
  func.func @transform_0(%arg0: i32) -> (i32, i32) {
    %c0_i32 = arith.constant 0 : i32
    %c0_i32_0 = arith.constant 0 : i32
    %c0_i32_1 = arith.constant 0 : i32
    return %c0_i32, %c0_i32_0 : i32, i32
  }
  func.func @transform_1(%arg0: i32) -> (i32, i32) {
    %c0_i32 = arith.constant 0 : i32
    %c0_i32_0 = arith.constant 0 : i32
    return %c0_i32, %arg0 : i32, i32
  }
  func.func @transform_2(%arg0: i32) -> (i32, i32) {
    %c0_i32 = arith.constant 0 : i32
    %c0_i32_0 = arith.constant 0 : i32
    return %c0_i32, %arg0 : i32, i32
  }
  func.func @transform_3(%arg0: i32) -> (i32, i32) {
    %c0_i32 = arith.constant 0 : i32
    %c0_i32_0 = arith.constant 0 : i32
    return %c0_i32, %arg0 : i32, i32
  }
}

</mosaic_0001>

<llo_original>
// kernel: _forward_impl.4
$region0: #{_forward_impl.4}
  #allocation0 [shape = 'u32[]', space=smem, size = 0x4, offset = 0x4, fixed_abs, tag = 'smem constant byte address 0x4 - core index']
  #allocation1 [shape = 'u32[72,128]{1,0:T(1,128)}', space=vmem, size = 0x9000, scoped, tag = 'internal scratch']
  %s0 = inlined_call_operand.vmem [shape: f32[6,36], index: 0, kind: input, shape index: {}]
  %s1 = inlined_call_operand.vmem [shape: f32[36,128], index: 1, kind: input, shape index: {}]
  %s2 = inlined_call_operand.vmem [shape: f32[6,128], index: 2, kind: input, shape index: {}]
  %s3 = inlined_call_operand.vmem [shape: f32[6,1], index: 3, kind: input, shape index: {}]
  %s4 = inlined_call_operand.vmem [shape: f32[6,1], index: 4, kind: input, shape index: {}]
  %s5 = inlined_call_operand.vmem [shape: f32[6,128], index: 5, kind: output, shape index: {0}]
  %s6 = inlined_call_operand.vmem [shape: f32[6,128], index: 6, kind: output, shape index: {1}]
  %7 = xla_tuple %s5, %s6
  %s8 = sld [smem:[#allocation0]]
  $region38: #{_forward_impl.4} parent=0
    _
  %s10 = ssub.s32 1, %s8
  %s11 = scalar_select 0, %s10, %s8
  // Predicated region
  $region2: #{_forward_impl.4} parent=0 // pred_check
    _
  $region3: #{_forward_impl.4} parent=0 // pred_check_branch
    %13 = sbr.rel (0) target = $region5
  $region4: #{_forward_impl.4} parent=0 // pred_region
    _
  $region5: #{_forward_impl.4} parent=0 // pred_fallthru
    _
  // Predicated region
  $region6: #{_forward_impl.4} parent=0 // pred_check
    _
  $region7: #{_forward_impl.4} parent=0 // pred_check_branch
    %15 = sbr.rel (0) target = $region9
  $region8: #{_forward_impl.4} parent=0 // pred_region
    _
  $region9: #{_forward_impl.4} parent=0 // pred_fallthru
    _
  // Predicated region
  $region10: #{_forward_impl.4} parent=0 // pred_check
    _
  $region11: #{_forward_impl.4} parent=0 // pred_check_branch
    %17 = sbr.rel (0) target = $region13
  $region12: #{_forward_impl.4} parent=0 // pred_region
    _
  $region13: #{_forward_impl.4} parent=0 // pred_fallthru
    _
  // Predicated region
  $region14: #{_forward_impl.4} parent=0 // pred_check
    _
  $region15: #{_forward_impl.4} parent=0 // pred_check_branch
    %19 = sbr.rel (0) target = $region17
  $region16: #{_forward_impl.4} parent=0 // pred_region
    _
  $region17: #{_forward_impl.4} parent=0 // pred_fallthru
    _
  // Predicated region
  $region18: #{_forward_impl.4} parent=0 // pred_check
    _
  $region19: #{_forward_impl.4} parent=0 // pred_check_branch
    %21 = sbr.rel (0) target = $region21
  $region20: #{_forward_impl.4} parent=0 // pred_region
    _
  $region21: #{_forward_impl.4} parent=0 // pred_fallthru
    _
  %v22 = vld [vmem:[%s0] sm:$0x3f]
  %v23 = vld [vmem:[%s1] sm:$0xff]
  %v24 = vld [vmem:[%s1 + $0x8] sm:$0xff]
  %v25 = vld [vmem:[%s1 + $0x10] sm:$0xff]
  %v26 = vld [vmem:[%s1 + $0x18] sm:$0xff]
  %v27 = vld [vmem:[%s1 + $0x20] sm:$0xf]
  %vm28 = vcmask 293888
  %v30 = vsel %vm28, %v22, 0
  %vm32 = vcmask 1043456
  %v34 = vsel %vm32, %v27, 0
  %36 = vmatpush.msra.mxu0 0.0
  %37 = vmatpush.msra.mxu0 0.0
  %38 = vmatpush.msra.mxu0 0.0
  %39 = vmatpush.msra.mxu0 0.0
  %40 = vmatpush.msra.mxu0 0.0
  %41 = vmatpush.msra.mxu0 0.0
  %42 = vmatpush.msra.mxu0 0.0
  %43 = vmatpush.msra.mxu0 0.0
  %44 = vmatpush.msra.mxu0 0.0
  %45 = vmatpush.msra.mxu0 0.0
  %46 = vmatpush.msra.mxu0 0.0
  %47 = vmatpush.msra.mxu0 %v34
  %48 = vmatpush.msra.mxu0 %v26
  %49 = vmatpush.msra.mxu0 %v25
  %50 = vmatpush.msra.mxu0 %v24
  %51 = vmatpush.msra.mxu0 %v23
  %52 = vmatmul.f32.gmra.mxu0 %v30
  %v53 = vpop.f32.mrf.mxu0
  %v54 = vadd.f32 0.0, %v53
  %55 = vdwg.mxu0
  %56 = vst [vmem:[%s5] sm:$0x3f] %v54
  %v57 = vld [vmem:[%s2] sm:$0x3f]
  %v58 = vadd.f32 %v54, %v57
  %v59 = vld [vmem:[%s3] sm:$0x3f]
  %61 = vset.pattern.permute.xlu0 0
  %62 = vperm.xlu0 %61, %v59
  %v63 = vpop.permute.xlu0 %62
  %v65 = vmul.f32 %v58, %v63
  %v66 = vld [vmem:[%s4] sm:$0x3f]
  %68 = vset.pattern.permute.xlu0 0
  %69 = vperm.xlu0 %68, %v66
  %v70 = vpop.permute.xlu0 %69
  %v72 = vadd.f32 %v65, %v70
  %v73 = vmax.f32 %v72, 0.0
  %74 = vst [vmem:[%s6] sm:$0x3f] %v73
  // Predicated region
  $region22: #{_forward_impl.4} parent=0 // pred_check
    _
  $region23: #{_forward_impl.4} parent=0 // pred_check_branch
    %76 = sbr.rel (0) target = $region25
  $region24: #{_forward_impl.4} parent=0 // pred_region
    _
  $region25: #{_forward_impl.4} parent=0 // pred_fallthru
    _
  // Predicated region
  $region26: #{_forward_impl.4} parent=0 // pred_check
    _
  $region27: #{_forward_impl.4} parent=0 // pred_check_branch
    %78 = sbr.rel (0) target = $region29
  $region28: #{_forward_impl.4} parent=0 // pred_region
    _
  $region29: #{_forward_impl.4} parent=0 // pred_fallthru
    _
  // Predicated region
  $region30: #{_forward_impl.4} parent=0 // pred_check
    _
  $region31: #{_forward_impl.4} parent=0 // pred_check_branch
    %80 = sbr.rel (0) target = $region33
  $region32: #{_forward_impl.4} parent=0 // pred_region
    _
  $region33: #{_forward_impl.4} parent=0 // pred_fallthru
    _
  // Predicated region
  $region34: #{_forward_impl.4} parent=0 // pred_check
    _
  $region35: #{_forward_impl.4} parent=0 // pred_check_branch
    %82 = sbr.rel (0) target = $region37
  $region36: #{_forward_impl.4} parent=0 // pred_region
    _
  $region37: #{_forward_impl.4} parent=0 // pred_fallthru
    _

// kernel: _forward_impl.5
$region0: #{_forward_impl.5}
  #allocation0 [shape = 'u32[]', space=smem, size = 0x4, offset = 0x4, fixed_abs, tag = 'smem constant byte address 0x4 - core index']
  #allocation1 [shape = 'u32[72,128]{1,0:T(1,128)}', space=vmem, size = 0x9000, scoped, tag = 'internal scratch']
  %s0 = inlined_call_operand.vmem [shape: f32[8,54], index: 0, kind: input, shape index: {}]
  %s1 = inlined_call_operand.vmem [shape: f32[54,32], index: 1, kind: input, shape index: {}]
  %s2 = inlined_call_operand.vmem [shape: f32[8,32], index: 2, kind: input, shape index: {}]
  %s3 = inlined_call_operand.vmem [shape: f32[8,1], index: 3, kind: input, shape index: {}]
  %s4 = inlined_call_operand.vmem [shape: f32[8,1], index: 4, kind: input, shape index: {}]
  %s5 = inlined_call_operand.vmem [shape: f32[8,32], index: 5, kind: output, shape index: {0}]
  %s6 = inlined_call_operand.vmem [shape: f32[8,32], index: 6, kind: output, shape index: {1}]
  %7 = xla_tuple %s5, %s6
  %s8 = sld [smem:[#allocation0]]
  $region38: #{_forward_impl.5} parent=0
    _
  %s10 = ssub.s32 1, %s8
  %s11 = scalar_select 0, %s10, %s8
  // Predicated region
  $region2: #{_forward_impl.5} parent=0 // pred_check
    _
  $region3: #{_forward_impl.5} parent=0 // pred_check_branch
    %13 = sbr.rel (0) target = $region5
  $region4: #{_forward_impl.5} parent=0 // pred_region
    _
  $region5: #{_forward_impl.5} parent=0 // pred_fallthru
    _
  // Predicated region
  $region6: #{_forward_impl.5} parent=0 // pred_check
    _
  $region7: #{_forward_impl.5} parent=0 // pred_check_branch
    %15 = sbr.rel (0) target = $region9
  $region8: #{_forward_impl.5} parent=0 // pred_region
    _
  $region9: #{_forward_impl.5} parent=0 // pred_fallthru
    _
  // Predicated region
  $region10: #{_forward_impl.5} parent=0 // pred_check
    _
  $region11: #{_forward_impl.5} parent=0 // pred_check_branch
    %17 = sbr.rel (0) target = $region13
  $region12: #{_forward_impl.5} parent=0 // pred_region
    _
  $region13: #{_forward_impl.5} parent=0 // pred_fallthru
    _
  // Predicated region
  $region14: #{_forward_impl.5} parent=0 // pred_check
    _
  $region15: #{_forward_impl.5} parent=0 // pred_check_branch
    %19 = sbr.rel (0) target = $region17
  $region16: #{_forward_impl.5} parent=0 // pred_region
    _
  $region17: #{_forward_impl.5} parent=0 // pred_fallthru
    _
  // Predicated region
  $region18: #{_forward_impl.5} parent=0 // pred_check
    _
  $region19: #{_forward_impl.5} parent=0 // pred_check_branch
    %21 = sbr.rel (0) target = $region21
  $region20: #{_forward_impl.5} parent=0 // pred_region
    _
  $region21: #{_forward_impl.5} parent=0 // pred_fallthru
    _
  %v22 = vld [vmem:[%s0] sm:$0xff]
  %v23 = vld [vmem:[%s1] sm:$0xff]
  %v24 = vld [vmem:[%s1 + $0x8] sm:$0xff]
  %v25 = vld [vmem:[%s1 + $0x10] sm:$0xff]
  %v26 = vld [vmem:[%s1 + $0x18] sm:$0xff]
  %v27 = vld [vmem:[%s1 + $0x20] sm:$0xff]
  %v28 = vld [vmem:[%s1 + $0x28] sm:$0xff]
  %v29 = vld [vmem:[%s1 + $0x30] sm:$0x3f]
  %vm30 = vcmask 441344
  %v32 = vsel %vm30, %v22, 0
  %vm34 = vcmask 1045504
  %v36 = vsel %vm34, %v29, 0
  %38 = vmatpush.msra.mxu0 0.0
  %39 = vmatpush.msra.mxu0 0.0
  %40 = vmatpush.msra.mxu0 0.0
  %41 = vmatpush.msra.mxu0 0.0
  %42 = vmatpush.msra.mxu0 0.0
  %43 = vmatpush.msra.mxu0 0.0
  %44 = vmatpush.msra.mxu0 0.0
  %45 = vmatpush.msra.mxu0 0.0
  %46 = vmatpush.msra.mxu0 0.0
  %47 = vmatpush.msra.mxu0 %v36
  %48 = vmatpush.msra.mxu0 %v28
  %49 = vmatpush.msra.mxu0 %v27
  %50 = vmatpush.msra.mxu0 %v26
  %51 = vmatpush.msra.mxu0 %v25
  %52 = vmatpush.msra.mxu0 %v24
  %53 = vmatpush.msra.mxu0 %v23
  %54 = vmatmul.f32.gmra.mxu0 %v32
  %v55 = vpop.f32.mrf.mxu0
  %v56 = vadd.f32 0.0, %v55
  %57 = vdwg.mxu0
  %vm58 = vcmask 261120
  %59 = vst.msk [vmem:[%s5] sm:$0xff] %vm58, %v56
  %v60 = vld [vmem:[%s2] sm:$0xff]
  %v61 = vadd.f32 %v56, %v60
  %v62 = vld [vmem:[%s3] sm:$0xff]
  %64 = vset.pattern.permute.xlu0 0
  %65 = vperm.xlu0 %64, %v62
  %v66 = vpop.permute.xlu0 %65
  %v68 = vmul.f32 %v61, %v66
  %v69 = vld [vmem:[%s4] sm:$0xff]
  %71 = vset.pattern.permute.xlu0 0
  %72 = vperm.xlu0 %71, %v69
  %v73 = vpop.permute.xlu0 %72
  %v75 = vadd.f32 %v68, %v73
  %v76 = vmax.f32 %v75, 0.0
  %77 = vst.msk [vmem:[%s6] sm:$0xff] %vm58, %v76
  // Predicated region
  $region22: #{_forward_impl.5} parent=0 // pred_check
    _
  $region23: #{_forward_impl.5} parent=0 // pred_check_branch
    %79 = sbr.rel (0) target = $region25
  $region24: #{_forward_impl.5} parent=0 // pred_region
    _
  $region25: #{_forward_impl.5} parent=0 // pred_fallthru
    _
  // Predicated region
  $region26: #{_forward_impl.5} parent=0 // pred_check
    _
  $region27: #{_forward_impl.5} parent=0 // pred_check_branch
    %81 = sbr.rel (0) target = $region29
  $region28: #{_forward_impl.5} parent=0 // pred_region
    _
  $region29: #{_forward_impl.5} parent=0 // pred_fallthru
    _
  // Predicated region
  $region30: #{_forward_impl.5} parent=0 // pred_check
    _
  $region31: #{_forward_impl.5} parent=0 // pred_check_branch
    %83 = sbr.rel (0) target = $region33
  $region32: #{_forward_impl.5} parent=0 // pred_region
    _
  $region33: #{_forward_impl.5} parent=0 // pred_fallthru
    _
  // Predicated region
  $region34: #{_forward_impl.5} parent=0 // pred_check
    _
  $region35: #{_forward_impl.5} parent=0 // pred_check_branch
    %85 = sbr.rel (0) target = $region37
  $region36: #{_forward_impl.5} parent=0 // pred_region
    _
  $region37: #{_forward_impl.5} parent=0 // pred_fallthru
    _

// kernel: _forward_impl.6
$region0: #{_forward_impl.6}
  #allocation0 [shape = 'u32[]', space=smem, size = 0x4, offset = 0x4, fixed_abs, tag = 'smem constant byte address 0x4 - core index']
  #allocation1 [shape = 'u32[72,128]{1,0:T(1,128)}', space=vmem, size = 0x9000, scoped, tag = 'internal scratch']
  %s0 = inlined_call_operand.vmem [shape: f32[24,72], index: 0, kind: input, shape index: {}]
  %s1 = inlined_call_operand.vmem [shape: f32[72,32], index: 1, kind: input, shape index: {}]
  %s2 = inlined_call_operand.vmem [shape: f32[24,32], index: 2, kind: input, shape index: {}]
  %s3 = inlined_call_operand.vmem [shape: f32[24,1], index: 3, kind: input, shape index: {}]
  %s4 = inlined_call_operand.vmem [shape: f32[24,1], index: 4, kind: input, shape index: {}]
  %s5 = inlined_call_operand.vmem [shape: f32[24,32], index: 5, kind: output, shape index: {0}]
  %s6 = inlined_call_operand.vmem [shape: f32[24,32], index: 6, kind: output, shape index: {1}]
  %7 = xla_tuple %s5, %s6
  %s8 = sld [smem:[#allocation0]]
  $region38: #{_forward_impl.6} parent=0
    _
  %s10 = ssub.s32 1, %s8
  %s11 = scalar_select 0, %s10, %s8
  // Predicated region
  $region2: #{_forward_impl.6} parent=0 // pred_check
    _
  $region3: #{_forward_impl.6} parent=0 // pred_check_branch
    %13 = sbr.rel (0) target = $region5
  $region4: #{_forward_impl.6} parent=0 // pred_region
    _
  $region5: #{_forward_impl.6} parent=0 // pred_fallthru
    _
  // Predicated region
  $region6: #{_forward_impl.6} parent=0 // pred_check
    _
  $region7: #{_forward_impl.6} parent=0 // pred_check_branch
    %15 = sbr.rel (0) target = $region9
  $region8: #{_forward_impl.6} parent=0 // pred_region
    _
  $region9: #{_forward_impl.6} parent=0 // pred_fallthru
    _
  // Predicated region
  $region10: #{_forward_impl.6} parent=0 // pred_check
    _
  $region11: #{_forward_impl.6} parent=0 // pred_check_branch
    %17 = sbr.rel (0) target = $region13
  $region12: #{_forward_impl.6} parent=0 // pred_region
    _
  $region13: #{_forward_impl.6} parent=0 // pred_fallthru
    _
  // Predicated region
  $region14: #{_forward_impl.6} parent=0 // pred_check
    _
  $region15: #{_forward_impl.6} parent=0 // pred_check_branch
    %19 = sbr.rel (0) target = $region17
  $region16: #{_forward_impl.6} parent=0 // pred_region
    _
  $region17: #{_forward_impl.6} parent=0 // pred_fallthru
    _
  // Predicated region
  $region18: #{_forward_impl.6} parent=0 // pred_check
    _
  $region19: #{_forward_impl.6} parent=0 // pred_check_branch
    %21 = sbr.rel (0) target = $region21
  $region20: #{_forward_impl.6} parent=0 // pred_region
    _
  $region21: #{_forward_impl.6} parent=0 // pred_fallthru
    _
  %v22 = vld [vmem:[%s0] sm:$0xff]
  %v23 = vld [vmem:[%s0 + $0x8] sm:$0xff]
  %v24 = vld [vmem:[%s0 + $0x10] sm:$0xff]
  %v25 = vld [vmem:[%s1] sm:$0xff]
  %v26 = vld [vmem:[%s1 + $0x8] sm:$0xff]
  %v27 = vld [vmem:[%s1 + $0x10] sm:$0xff]
  %v28 = vld [vmem:[%s1 + $0x18] sm:$0xff]
  %v29 = vld [vmem:[%s1 + $0x20] sm:$0xff]
  %v30 = vld [vmem:[%s1 + $0x28] sm:$0xff]
  %v31 = vld [vmem:[%s1 + $0x30] sm:$0xff]
  %v32 = vld [vmem:[%s1 + $0x38] sm:$0xff]
  %v33 = vld [vmem:[%s1 + $0x40] sm:$0xff]
  %vm34 = vcmask 588800
  %v36 = vsel %vm34, %v22, 0
  %v39 = vsel %vm34, %v23, 0
  %v42 = vsel %vm34, %v24, 0
  %44 = vmatpush.msra.mxu0 0.0
  %45 = vmatpush.msra.mxu0 0.0
  %46 = vmatpush.msra.mxu0 0.0
  %47 = vmatpush.msra.mxu0 0.0
  %48 = vmatpush.msra.mxu0 0.0
  %49 = vmatpush.msra.mxu0 0.0
  %50 = vmatpush.msra.mxu0 0.0
  %51 = vmatpush.msra.mxu0 %v33
  %52 = vmatpush.msra.mxu0 %v32
  %53 = vmatpush.msra.mxu0 %v31
  %54 = vmatpush.msra.mxu0 %v30
  %55 = vmatpush.msra.mxu0 %v29
  %56 = vmatpush.msra.mxu0 %v28
  %57 = vmatpush.msra.mxu0 %v27
  %58 = vmatpush.msra.mxu0 %v26
  %59 = vmatpush.msra.mxu0 %v25
  %60 = vmatmul.f32.gmra.mxu0 %v36
  %v61 = vpop.f32.mrf.mxu0
  %v62 = vadd.f32 0.0, %v61
  %63 = vmatmul.f32.gmra.mxu0 %v39
  %v64 = vpop.f32.mrf.mxu0
  %v65 = vadd.f32 0.0, %v64
  %66 = vmatmul.f32.gmra.mxu0 %v42
  %v67 = vpop.f32.mrf.mxu0
  %v68 = vadd.f32 0.0, %v67
  %69 = vdwg.mxu0
  %vm70 = vcmask 261120
  %71 = vst.msk [vmem:[%s5] sm:$0xff] %vm70, %v62
  %72 = vst.msk [vmem:[%s5 + $0x8] sm:$0xff] %vm70, %v65
  %73 = vst.msk [vmem:[%s5 + $0x10] sm:$0xff] %vm70, %v68
  %v74 = vld [vmem:[%s2] sm:$0xff]
  %v75 = vld [vmem:[%s2 + $0x8] sm:$0xff]
  %v76 = vld [vmem:[%s2 + $0x10] sm:$0xff]
  %v77 = vadd.f32 %v62, %v74
  %v78 = vadd.f32 %v65, %v75
  %v79 = vadd.f32 %v68, %v76
  %v80 = vld [vmem:[%s3] sm:$0xff]
  %v81 = vld [vmem:[%s3 + $0x8] sm:$0xff]
  %v82 = vld [vmem:[%s3 + $0x10] sm:$0xff]
  %84 = vset.pattern.permute.xlu0 0
  %85 = vperm.xlu0 %84, %v80
  %v86 = vpop.permute.xlu0 %85
  %89 = vset.pattern.permute.xlu0 0
  %90 = vperm.xlu0 %89, %v81
  %v91 = vpop.permute.xlu0 %90
  %94 = vset.pattern.permute.xlu0 0
  %95 = vperm.xlu0 %94, %v82
  %v96 = vpop.permute.xlu0 %95
  %v98 = vmul.f32 %v77, %v86
  %v99 = vmul.f32 %v78, %v91
  %v100 = vmul.f32 %v79, %v96
  %v101 = vld [vmem:[%s4] sm:$0xff]
  %v102 = vld [vmem:[%s4 + $0x8] sm:$0xff]
  %v103 = vld [vmem:[%s4 + $0x10] sm:$0xff]
  %105 = vset.pattern.permute.xlu0 0
  %106 = vperm.xlu0 %105, %v101
  %v107 = vpop.permute.xlu0 %106
  %110 = vset.pattern.permute.xlu0 0
  %111 = vperm.xlu0 %110, %v102
  %v112 = vpop.permute.xlu0 %111
  %115 = vset.pattern.permute.xlu0 0
  %116 = vperm.xlu0 %115, %v103
  %v117 = vpop.permute.xlu0 %116
  %v119 = vadd.f32 %v98, %v107
  %v120 = vadd.f32 %v99, %v112
  %v121 = vadd.f32 %v100, %v117
  %v122 = vmax.f32 %v119, 0.0
  %v123 = vmax.f32 %v120, 0.0
  %v124 = vmax.f32 %v121, 0.0
  %125 = vst.msk [vmem:[%s6] sm:$0xff] %vm70, %v122
  %126 = vst.msk [vmem:[%s6 + $0x8] sm:$0xff] %vm70, %v123
  %127 = vst.msk [vmem:[%s6 + $0x10] sm:$0xff] %vm70, %v124
  // Predicated region
  $region22: #{_forward_impl.6} parent=0 // pred_check
    _
  $region23: #{_forward_impl.6} parent=0 // pred_check_branch
    %129 = sbr.rel (0) target = $region25
  $region24: #{_forward_impl.6} parent=0 // pred_region
    _
  $region25: #{_forward_impl.6} parent=0 // pred_fallthru
    _
  // Predicated region
  $region26: #{_forward_impl.6} parent=0 // pred_check
    _
  $region27: #{_forward_impl.6} parent=0 // pred_check_branch
    %131 = sbr.rel (0) target = $region29
  $region28: #{_forward_impl.6} parent=0 // pred_region
    _
  $region29: #{_forward_impl.6} parent=0 // pred_fallthru
    _
  // Predicated region
  $region30: #{_forward_impl.6} parent=0 // pred_check
    _
  $region31: #{_forward_impl.6} parent=0 // pred_check_branch
    %133 = sbr.rel (0) target = $region33
  $region32: #{_forward_impl.6} parent=0 // pred_region
    _
  $region33: #{_forward_impl.6} parent=0 // pred_fallthru
    _
  // Predicated region
  $region34: #{_forward_impl.6} parent=0 // pred_check
    _
  $region35: #{_forward_impl.6} parent=0 // pred_check_branch
    %135 = sbr.rel (0) target = $region37
  $region36: #{_forward_impl.6} parent=0 // pred_region
    _
  $region37: #{_forward_impl.6} parent=0 // pred_fallthru
    _

// kernel: _forward_impl.7
$region0: #{_forward_impl.7}
  #allocation0 [shape = 'u32[]', space=smem, size = 0x4, offset = 0x4, fixed_abs, tag = 'smem constant byte address 0x4 - core index']
  #allocation1 [shape = 'u32[72,128]{1,0:T(1,128)}', space=vmem, size = 0x9000, scoped, tag = 'internal scratch']
  %s0 = inlined_call_operand.vmem [shape: f32[16,54], index: 0, kind: input, shape index: {}]
  %s1 = inlined_call_operand.vmem [shape: f32[54,128], index: 1, kind: input, shape index: {}]
  %s2 = inlined_call_operand.vmem [shape: f32[16,128], index: 2, kind: input, shape index: {}]
  %s3 = inlined_call_operand.vmem [shape: f32[16,128], index: 3, kind: output, shape index: {}]
  %s4 = sld [smem:[#allocation0]]
  $region22: #{_forward_impl.7} parent=0
    _
  %s6 = ssub.s32 1, %s4
  %s7 = scalar_select 0, %s6, %s4
  // Predicated region
  $region2: #{_forward_impl.7} parent=0 // pred_check
    _
  $region3: #{_forward_impl.7} parent=0 // pred_check_branch
    %9 = sbr.rel (0) target = $region5
  $region4: #{_forward_impl.7} parent=0 // pred_region
    _
  $region5: #{_forward_impl.7} parent=0 // pred_fallthru
    _
  // Predicated region
  $region6: #{_forward_impl.7} parent=0 // pred_check
    _
  $region7: #{_forward_impl.7} parent=0 // pred_check_branch
    %11 = sbr.rel (0) target = $region9
  $region8: #{_forward_impl.7} parent=0 // pred_region
    _
  $region9: #{_forward_impl.7} parent=0 // pred_fallthru
    _
  // Predicated region
  $region10: #{_forward_impl.7} parent=0 // pred_check
    _
  $region11: #{_forward_impl.7} parent=0 // pred_check_branch
    %13 = sbr.rel (0) target = $region13
  $region12: #{_forward_impl.7} parent=0 // pred_region
    _
  $region13: #{_forward_impl.7} parent=0 // pred_fallthru
    _
  %v14 = vld [vmem:[%s0] sm:$0xff]
  %v15 = vld [vmem:[%s0 + $0x8] sm:$0xff]
  %v16 = vld [vmem:[%s1] sm:$0xff]
  %v17 = vld [vmem:[%s1 + $0x8] sm:$0xff]
  %v18 = vld [vmem:[%s1 + $0x10] sm:$0xff]
  %v19 = vld [vmem:[%s1 + $0x18] sm:$0xff]
  %v20 = vld [vmem:[%s1 + $0x20] sm:$0xff]
  %v21 = vld [vmem:[%s1 + $0x28] sm:$0xff]
  %v22 = vld [vmem:[%s1 + $0x30] sm:$0x3f]
  %v23 = vld [vmem:[%s2] sm:$0xff]
  %v24 = vld [vmem:[%s2 + $0x8] sm:$0xff]
  %vm25 = vcmask 441344
  %v27 = vsel %vm25, %v14, 0
  %v30 = vsel %vm25, %v15, 0
  %vm32 = vcmask 1045504
  %v34 = vsel %vm32, %v22, 0
  %36 = vmatpush.msra.mxu0 0.0
  %37 = vmatpush.msra.mxu0 0.0
  %38 = vmatpush.msra.mxu0 0.0
  %39 = vmatpush.msra.mxu0 0.0
  %40 = vmatpush.msra.mxu0 0.0
  %41 = vmatpush.msra.mxu0 0.0
  %42 = vmatpush.msra.mxu0 0.0
  %43 = vmatpush.msra.mxu0 0.0
  %44 = vmatpush.msra.mxu0 0.0
  %45 = vmatpush.msra.mxu0 %v34
  %46 = vmatpush.msra.mxu0 %v21
  %47 = vmatpush.msra.mxu0 %v20
  %48 = vmatpush.msra.mxu0 %v19
  %49 = vmatpush.msra.mxu0 %v18
  %50 = vmatpush.msra.mxu0 %v17
  %51 = vmatpush.msra.mxu0 %v16
  %52 = vmatmul.f32.gmra.mxu0 %v27
  %v53 = vpop.f32.mrf.mxu0
  %v54 = vadd.f32 %v23, %v53
  %55 = vmatmul.f32.gmra.mxu0 %v30
  %v56 = vpop.f32.mrf.mxu0
  %v57 = vadd.f32 %v24, %v56
  %58 = vdwg.mxu0
  %59 = vst [vmem:[%s3] sm:$0xff] %v54
  %60 = vst [vmem:[%s3 + $0x8] sm:$0xff] %v57
  // Predicated region
  $region14: #{_forward_impl.7} parent=0 // pred_check
    _
  $region15: #{_forward_impl.7} parent=0 // pred_check_branch
    %62 = sbr.rel (0) target = $region17
  $region16: #{_forward_impl.7} parent=0 // pred_region
    _
  $region17: #{_forward_impl.7} parent=0 // pred_fallthru
    _
  // Predicated region
  $region18: #{_forward_impl.7} parent=0 // pred_check
    _
  $region19: #{_forward_impl.7} parent=0 // pred_check_branch
    %64 = sbr.rel (0) target = $region21
  $region20: #{_forward_impl.7} parent=0 // pred_region
    _
  $region21: #{_forward_impl.7} parent=0 // pred_fallthru
    _

</llo_original>
